<compile_context>
chip_gen: v7x
topology: tpu7x:2x2x1
jax: 0.10.0
libtpu: 0.0.40
codegen_flags: <defaults>
</compile_context>

<pallas_src>
import functools

import jax
import jax.numpy as jnp
from jax import lax
from jax.experimental import pallas as pl
from jax.experimental.pallas import tpu as pltpu


# --------------------------------------------------------------------------
# Pallas kernel (built per static config: batch block, padding, precision)
# --------------------------------------------------------------------------

def _make_sat_kernel(bb, n_pad, n_real, vs_is_bf16):
    """Kernel for `bb` batch elements per grid step.

    x_ref:   (bb, Np, F*T)   flattened graph signal
    xt_ref:  (bb, F*T, Np)   pre-transposed graph signal
    wp_ref:  (F*T, F*T)      folded W1/W2/W3 bilinear weight
    bs_ref:  (Np, Np)        bias
    vs_ref:  (Np, Np)        Vs (bf16 if vs_is_bf16 else f32)
    out_ref: (bb, Np, Np)    softmax(Vs @ sigmoid(x Wp x^T + bs), dim over rows)
    """

    def kernel(x_ref, xt_ref, wp_ref, bs_ref, vs_ref, out_ref):
        wp = wp_ref[...]
        bs = bs_ref[...]

        # product_b = x_b @ (Wp @ x_b^T); both dots are canonical MXU matmuls.
        sig_blocks = []
        for b in range(bb):
            z = jnp.dot(wp, xt_ref[b], preferred_element_type=jnp.float32)      # (FT, Np)
            product = jnp.dot(x_ref[b], z, preferred_element_type=jnp.float32)  # (Np, Np)
            sig_blocks.append(jax.nn.sigmoid(product + bs))

        # Pack batch elements along lanes: one wide Vs matmul (Np, bb*Np).
        sig_wide = sig_blocks[0] if bb == 1 else jnp.concatenate(sig_blocks, axis=1)
        if vs_is_bf16:
            sig_wide = sig_wide.astype(jnp.bfloat16)
        s_wide = jnp.dot(vs_ref[...], sig_wide,
                         preferred_element_type=jnp.float32)                    # (Np, bb*Np)

        # Mask padded vertex rows so they do not contribute to the softmax denom.
        if n_real < n_pad:
            row = lax.broadcasted_iota(jnp.int32, s_wide.shape, 0)
            s_wide = jnp.where(row < n_real, s_wide, -1e30)

        # F.softmax(S, dim=1) == softmax over axis 0 of each (Np, Np) tile;
        # columns are independent so the wide layout is exact.
        s_max = jnp.max(s_wide, axis=0, keepdims=True)
        e = jnp.exp(s_wide - s_max)
        inv = pl.reciprocal(jnp.sum(e, axis=0, keepdims=True))                  # exact
        out_wide = e * inv

        for b in range(bb):
            out_ref[b] = out_wide[:, b * n_pad:(b + 1) * n_pad]

    return kernel


# --------------------------------------------------------------------------
# Wrapper
# --------------------------------------------------------------------------

@functools.partial(jax.jit, static_argnames=("use_bf16_vs",))
def spatial_attention(x, w1, w2, w3, bs, vs, *, use_bf16_vs=True):
    """x: (B, N, F_in, T) float32, exactly like the PyTorch module.

    Returns the (B, N, N) normalized spatial attention scores.
    """
    B, N, F, T = x.shape
    FT = F * T

    # Fold W1, W2, W3 into one bilinear weight (algebraically exact):
    #   Wp[(f',t'), (f,t)] = W1[t'] * W2[f',t] * W3[f]
    wp = jnp.einsum('b,ad,c->abcd', w1, w2, w3).reshape(FT, FT)
    bs2d = bs.reshape(N, N)

    # Lane-dense padding of the vertex axis for large, non-128-aligned graphs.
    n_pad = ((N + 127) // 128) * 128 if (N > 128 and N % 128 != 0) else N

    x2d = x.reshape(B, N, FT)
    if n_pad != N:
        x2d = jnp.pad(x2d, ((0, 0), (0, n_pad - N), (0, 0)))
        bs2d = jnp.pad(bs2d, ((0, n_pad - N), (0, n_pad - N)))
        vs = jnp.pad(vs, ((0, n_pad - N), (0, n_pad - N)))
    x2dT = jnp.swapaxes(x2d, 1, 2)                     # (B, FT, Np): transpose once in HBM

    vs_in = vs.astype(jnp.bfloat16) if use_bf16_vs else vs

    # Pack 2 batches per grid step when that still leaves >= 2 grid steps
    # (keeps both v7x TensorCores busy under the "parallel" grid axis).
    bb = 2 if (B % 2 == 0 and B >= 4) else 1
    grid = (B // bb,)

    kernel = _make_sat_kernel(bb, n_pad, N, use_bf16_vs)

    # Rough VMEM footprint; only override the scoped limit when we would exceed
    # v5e's 16 MiB default (never at demo sizes).
    f32b = 4
    vs_b = 2 if use_bf16_vs else 4
    vmem_est = (2 * bb * n_pad * FT * f32b            # x2d   (double buffered)
                + 2 * bb * FT * n_pad * f32b          # x2dT
                + 2 * bb * n_pad * n_pad * f32b       # out
                + 2 * FT * FT * f32b                  # Wp
                + 2 * n_pad * n_pad * f32b            # bs
                + 2 * n_pad * n_pad * vs_b            # Vs
                + 8 * bb * n_pad * n_pad * f32b)      # in-kernel temporaries
    compiler_kwargs = {}
    if vmem_est > 16 * 1024 * 1024:
        compiler_kwargs = dict(vmem_limit_bytes=min(int(vmem_est), 64 * 1024 * 1024))

    out = pl.pallas_call(
        kernel,
        out_shape=jax.ShapeDtypeStruct((B, n_pad, n_pad), jnp.float32),
        grid=grid,
        in_specs=[
            pl.BlockSpec((bb, n_pad, FT), lambda b: (b, 0, 0)),
            pl.BlockSpec((bb, FT, n_pad), lambda b: (b, 0, 0)),
            pl.BlockSpec((FT, FT), lambda b: (0, 0)),
            pl.BlockSpec((n_pad, n_pad), lambda b: (0, 0)),
            pl.BlockSpec((n_pad, n_pad), lambda b: (0, 0)),
        ],
        out_specs=pl.BlockSpec((bb, n_pad, n_pad), lambda b: (b, 0, 0)),
        compiler_params=pltpu.CompilerParams(
            dimension_semantics=("parallel",), **compiler_kwargs),
    )(x2d, x2dT, wp, bs2d, vs_in)

    if n_pad != N:
        out = out[:, :N, :N]
    return out


# --------------------------------------------------------------------------
# Pure-JAX reference (mirrors the PyTorch forward literally)
# --------------------------------------------------------------------------

def spatial_attention_ref(x, w1, w2, w3, bs, vs):
    lhs = jnp.matmul(jnp.matmul(x, w1), w2)              # (B, N, T)
    rhs = jnp.swapaxes(jnp.matmul(w3, x), -1, -2)        # (B, T, N)
    product = jnp.matmul(lhs, rhs)                       # (B, N, N)
    s = jnp.matmul(vs, jax.nn.sigmoid(product + bs))     # (B, N, N)
    return jax.nn.softmax(s, axis=1)


# --------------------------------------------------------------------------

def _run_case(key, B, N, F_in, T, use_bf16_vs=True, tol=1e-3):
    ks = jax.random.split(key, 6)
    x = jax.random.normal(ks[0], (B, N, F_in, T), jnp.float32)
    w1 = jax.random.uniform(ks[1], (T,), jnp.float32, -0.1, 0.1)
    w2 = jax.random.uniform(ks[2], (F_in, T), jnp.float32, -0.1, 0.1)
    w3 = jax.random.uniform(ks[3], (F_in,), jnp.float32, -0.1, 0.1)
    bs = jax.random.uniform(ks[4], (1, N, N), jnp.float32, -0.1, 0.1)
    vs = jax.random.uniform(ks[5], (N, N), jnp.float32, -0.1, 0.1)

    out = jax.block_until_ready(
        spatial_attention(x, w1, w2, w3, bs, vs, use_bf16_vs=use_bf16_vs))
    ref = spatial_attention_ref(x, w1, w2, w3, bs, vs)

    assert out.shape == (B, N, N), out.shape
    assert bool(jnp.all(jnp.isfinite(out)))
    err = float(jnp.max(jnp.abs(out - ref)))
    assert err < tol, f"max abs error {err}"
    return err


if __name__ == "__main__":
    key = jax.random.PRNGKey(0)
    k1, k2, k3, k4 = jax.random.split(key, 4)

    # Main config: lane-dense N = 128, one batch / step (megacore-friendly for B=2).
    _run_case(k1, B=2, N=128, F_in=4, T=12, use_bf16_vs=True, tol=1e-3)
    # B >= 4: 2 batches packed per step -> 256-wide Vs matmul.
    _run_case(k2, B=4, N=128, F_in=4, T=12, use_bf16_vs=True, tol=1e-3)
    # Tiny / unaligned config (as used inside MRSTAN blocks), pure-f32 path.
    _run_case(k3, B=2, N=16, F_in=1, T=12, use_bf16_vs=False, tol=1e-4)
    # Non-128-multiple N > 128: exercises lane-dense padding + row masking.
    _run_case(k4, B=2, N=160, F_in=2, T=8, use_bf16_vs=True, tol=1e-3)

    print("KERNEL_OK")
</pallas_src>

<mosaic_0001>
module attributes {stable_mosaic.version = 11 : i64} {
  func.func @kernel(%arg0: i32, %arg1: memref<1x128x48xf32, #tpu.memory_space<vmem>>, %arg2: memref<1x48x128xf32, #tpu.memory_space<vmem>>, %arg3: memref<48x48xf32, #tpu.memory_space<vmem>>, %arg4: memref<128x128xf32, #tpu.memory_space<vmem>>, %arg5: memref<128x128xbf16, #tpu.memory_space<vmem>>, %arg6: memref<1x128x128xf32, #tpu.memory_space<vmem>>) attributes {dimension_semantics = [#tpu.dimension_semantics<parallel>], iteration_bounds = array<i64: 2>, scalar_prefetch = 0 : i64, scratch_operands = 0 : i64, tpu.core_type = #tpu.core_type<tc>, window_params = [{transform_indices = @transform_0, window_bounds = array<i64: 1, 128, 48>}, {transform_indices = @transform_1, window_bounds = array<i64: 1, 48, 128>}, {pipeline_mode = #tpu.pipeline_mode<synchronous>, transform_indices = @transform_2, window_bounds = array<i64: 48, 48>}, {pipeline_mode = #tpu.pipeline_mode<synchronous>, transform_indices = @transform_3, window_bounds = array<i64: 128, 128>}, {pipeline_mode = #tpu.pipeline_mode<synchronous>, transform_indices = @transform_4, window_bounds = array<i64: 128, 128>}, {transform_indices = @transform_5, window_bounds = array<i64: 1, 128, 128>}]} {
    %c0 = arith.constant 0 : index
    %c0_0 = arith.constant 0 : index
    %0 = vector.load %arg3[%c0, %c0_0] : memref<48x48xf32, #tpu.memory_space<vmem>>, vector<48x48xf32>
    %c0_1 = arith.constant 0 : index
    %c0_2 = arith.constant 0 : index
    %1 = vector.load %arg4[%c0_1, %c0_2] : memref<128x128xf32, #tpu.memory_space<vmem>>, vector<128x128xf32>
    %c0_3 = arith.constant 0 : index
    %c0_4 = arith.constant 0 : index
    %c0_5 = arith.constant 0 : index
    %2 = vector.load %arg2[%c0_3, %c0_4, %c0_5] : memref<1x48x128xf32, #tpu.memory_space<vmem>>, vector<1x48x128xf32>
    %3 = vector.shape_cast %2 : vector<1x48x128xf32> to vector<48x128xf32>
    %cst = arith.constant dense<0.000000e+00> : vector<48x128xf32>
    %4 = tpu.matmul %0, %3, %cst {dimension_numbers = #tpu.dot_dimension_numbers<[1], [0], [0], [1], [0, 0, 1, 1], [], []>} : vector<48x48xf32>, vector<48x128xf32>, vector<48x128xf32> -> vector<48x128xf32>
    %c0_6 = arith.constant 0 : index
    %c0_7 = arith.constant 0 : index
    %c0_8 = arith.constant 0 : index
    %5 = vector.load %arg1[%c0_6, %c0_7, %c0_8] : memref<1x128x48xf32, #tpu.memory_space<vmem>>, vector<1x128x48xf32>
    %6 = vector.shape_cast %5 : vector<1x128x48xf32> to vector<128x48xf32>
    %cst_9 = arith.constant dense<0.000000e+00> : vector<128x128xf32>
    %7 = tpu.matmul %6, %4, %cst_9 {dimension_numbers = #tpu.dot_dimension_numbers<[1], [0], [0], [1], [0, 0, 1, 1], [], []>} : vector<128x48xf32>, vector<48x128xf32>, vector<128x128xf32> -> vector<128x128xf32>
    %8 = arith.addf %7, %1 : vector<128x128xf32>
    %9 = arith.negf %8 : vector<128x128xf32>
    %10 = math.exp %9 : vector<128x128xf32>
    %cst_10 = arith.constant 1.000000e+00 : f32
    %11 = vector.broadcast %cst_10 : f32 to vector<128x128xf32>
    %12 = arith.addf %11, %10 : vector<128x128xf32>
    %13 = arith.divf %11, %12 : vector<128x128xf32>
    %14 = arith.truncf %13 : vector<128x128xf32> to vector<128x128xbf16>
    %c0_11 = arith.constant 0 : index
    %c0_12 = arith.constant 0 : index
    %15 = vector.load %arg5[%c0_11, %c0_12] : memref<128x128xbf16, #tpu.memory_space<vmem>>, vector<128x128xbf16>
    %cst_13 = arith.constant dense<0.000000e+00> : vector<128x128xf32>
    %16 = tpu.matmul %15, %14, %cst_13 {dimension_numbers = #tpu.dot_dimension_numbers<[1], [0], [0], [1], [0, 0, 1, 1], [], []>} : vector<128x128xbf16>, vector<128x128xbf16>, vector<128x128xf32> -> vector<128x128xf32>
    %cst_14 = arith.constant dense<0xFF800000> : vector<128xf32>
    %17 = vector.multi_reduction <maximumf>, %16, %cst_14 [0] : vector<128x128xf32> to vector<128xf32>
    %18 = vector.shape_cast %17 : vector<128xf32> to vector<1x128xf32>
    %19 = vector.broadcast %18 : vector<1x128xf32> to vector<128x128xf32>
    %20 = arith.subf %16, %19 : vector<128x128xf32>
    %21 = math.exp %20 : vector<128x128xf32>
    %cst_15 = arith.constant dense<0.000000e+00> : vector<128xf32>
    %22 = vector.multi_reduction <add>, %21, %cst_15 [0] : vector<128x128xf32> to vector<128xf32>
    %23 = vector.shape_cast %22 : vector<128xf32> to vector<1x128xf32>
    %24 = tpu.reciprocal %23 : vector<1x128xf32> -> vector<1x128xf32>
    %25 = vector.broadcast %24 : vector<1x128xf32> to vector<128x128xf32>
    %26 = arith.mulf %21, %25 : vector<128x128xf32>
    %c0_16 = arith.constant 0 : index
    %c0_17 = arith.constant 0 : index
    %c0_18 = arith.constant 0 : index
    %27 = vector.load %arg6[%c0_16, %c0_17, %c0_18] : memref<1x128x128xf32, #tpu.memory_space<vmem>>, vector<1x128x128xf32>
    %28 = vector.shape_cast %27 : vector<1x128x128xf32> to vector<128x128xf32>
    %29 = vector.shape_cast %26 : vector<128x128xf32> to vector<1x128x128xf32>
    tpu.vector_store %arg6[%c0_16, %c0_17, %c0_18], %29 {strides = array<i32>} : memref<1x128x128xf32, #tpu.memory_space<vmem>>, vector<1x128x128xf32>,
    return
  }
  func.func @transform_0(%arg0: i32) -> (i32, i32, i32) {
    %c0_i32 = arith.constant 0 : i32
    %c0_i32_0 = arith.constant 0 : i32
    %c0_i32_1 = arith.constant 0 : i32
    return %arg0, %c0_i32, %c0_i32_0 : i32, i32, i32
  }
  func.func @transform_1(%arg0: i32) -> (i32, i32, i32) {
    %c0_i32 = arith.constant 0 : i32
    %c0_i32_0 = arith.constant 0 : i32
    %c0_i32_1 = arith.constant 0 : i32
    return %arg0, %c0_i32, %c0_i32_0 : i32, i32, i32
  }
  func.func @transform_2(%arg0: i32) -> (i32, i32) {
    %c0_i32 = arith.constant 0 : i32
    %c0_i32_0 = arith.constant 0 : i32
    %c0_i32_1 = arith.constant 0 : i32
    return %c0_i32, %c0_i32_0 : i32, i32
  }
  func.func @transform_3(%arg0: i32) -> (i32, i32) {
    %c0_i32 = arith.constant 0 : i32
    %c0_i32_0 = arith.constant 0 : i32
    %c0_i32_1 = arith.constant 0 : i32
    return %c0_i32, %c0_i32_0 : i32, i32
  }
  func.func @transform_4(%arg0: i32) -> (i32, i32) {
    %c0_i32 = arith.constant 0 : i32
    %c0_i32_0 = arith.constant 0 : i32
    %c0_i32_1 = arith.constant 0 : i32
    return %c0_i32, %c0_i32_0 : i32, i32
  }
  func.func @transform_5(%arg0: i32) -> (i32, i32, i32) {
    %c0_i32 = arith.constant 0 : i32
    %c0_i32_0 = arith.constant 0 : i32
    %c0_i32_1 = arith.constant 0 : i32
    return %arg0, %c0_i32, %c0_i32_0 : i32, i32, i32
  }
}

</mosaic_0001>

<llo_original>
// kernel: spatial_attention.1
$region0: #{spatial_attention.1}
  #allocation0 [shape = 'u32[]', space=smem, size = 0x4, offset = 0x4, fixed_abs, tag = 'smem constant byte address 0x4 - core index']
  #allocation1 [shape = 'u32[144,128]{1,0:T(1,128)}', space=vmem, size = 0x12000, scoped, tag = 'internal scratch']
  %s0 = inlined_call_operand.vmem [shape: f32[2,128,48], index: 0, kind: input, shape index: {}]
  %s1 = inlined_call_operand.vmem [shape: f32[2,48,128], index: 1, kind: input, shape index: {}]
  %s2 = inlined_call_operand.vmem [shape: f32[48,48], index: 2, kind: input, shape index: {}]
  %s3 = inlined_call_operand.vmem [shape: f32[128,128], index: 3, kind: input, shape index: {}]
  %s4 = inlined_call_operand.vmem [shape: bf16[128,128], index: 4, kind: input, shape index: {}]
  %s5 = inlined_call_operand.hbm [shape: f32[2,128,128], index: 5, kind: output, shape index: {}]
  %s6 = sld [smem:[#allocation0]]
  $region53: #{spatial_attention.1} parent=0
    _
  %s8 = ssub.s32 1, %s6
  %s9 = scalar_select 0, %s8, %s6
  $region1: #{spatial_attention.1} parent=0
    #allocation2 [shape = 'u8[131072]{0}', space=vmem, size = 0x20000, scoped, tag = 'output window, operand 0']
    #allocation3 [shape = 's32[2]{0}', space=sflag, size = 0x8, scoped, tag = 'scoped memory for spatial_attention.1']
    %10 = vsyncpa [#allocation3], 0
    %s11 = scalar_lea.sflag [#allocation3], 1
    %12 = vsyncpa %s11, 0
    loop: start=0, step=1, limit=4
    $region2: #{spatial_attention.1} parent=1 // loop_pre_header
      _
    $region3: #{spatial_attention.1} parent=1 // loop_header
      %s14 = sphi 0, %s18
      %p15 = scmp.ge.s32.totalorder %s14, 4
      %s24 = sphi 0, %s26
      %s27 = sphi 0, %s24
      %s28 = sphi 0, %s27
      %s44 = sphi 0, %s28
      %s50 = sphi 0, %s52
      %s53 = sphi 0, %s50
      %s54 = sphi 0, %s53
      %s70 = sphi 0, %s54
      %s74 = sphi 0, %s74
      %s76 = sphi 0, %s74
      %s77 = sphi 0, %s76
      %s91 = sphi 0, %s77
      %s95 = sphi 0, %s95
      %s97 = sphi 0, %s95
      %s98 = sphi 0, %s97
      %s112 = sphi 0, %s98
      %s116 = sphi 0, %s116
      %s118 = sphi 0, %s116
      %s119 = sphi 0, %s118
      %s133 = sphi 0, %s119
      %s139 = sphi 0, %s141
      %s142 = sphi 0, %s139
      %s143 = sphi 0, %s142
      %s159 = sphi 0, %s143
    $region4: #{spatial_attention.1} parent=1 // loop_header_branch
      %17 = sbr.rel (%p15) target = $region8
    $region5: #{spatial_attention.1} parent=1 // loop_body
      %s19 = ssub.s32 %s14, 1
      %s20 = ssub.s32 %s14, 2
      %s21 = sadd.s32 %s14, 1
      %s22 = ssub.s32 %s14, %s21
      %p23 = scmp.eq.s32.totalorder %s22, 0
      %s25 = sadd.s32 %s24, 1
      %s26 = scalar_select %p23, %s24, %s25
      %p29 = pneg %p23
      %p30 = scmp.eq.s32.totalorder %s14, 1
      %p31 = por %p29, %p30
      %p32 = scmp.ne.s32.totalorder %s24, %s27
      %p33 = scmp.eq.s32.totalorder %s14, 0
      %p34 = por %p32, %p33
      %p35 = scmp.ne.s32.totalorder %s24, %s27
      %p36 = scmp.eq.s32.totalorder %s19, 1
      %p37 = por %p35, %p36
      %p38 = scmp.ne.s32.totalorder %s27, %s28
      %p39 = scmp.eq.s32.totalorder %s19, 0
      %p40 = por %p38, %p39
      %p41 = scmp.ne.s32.totalorder %s27, %s28
      %p42 = scmp.eq.s32.totalorder %s20, 1
      %p43 = por %p41, %p42
      %p45 = scmp.ne.s32.totalorder %s28, %s44
      %p46 = scmp.eq.s32.totalorder %s20, 0
      %p47 = por %p45, %p46
      %s48 = ssub.s32 %s14, %s21
      %p49 = scmp.eq.s32.totalorder %s48, 0
      %s51 = sadd.s32 %s50, 1
      %s52 = scalar_select %p49, %s50, %s51
      %p55 = pneg %p49
      %p56 = scmp.eq.s32.totalorder %s14, 1
      %p57 = por %p55, %p56
      %p58 = scmp.ne.s32.totalorder %s50, %s53
      %p59 = scmp.eq.s32.totalorder %s14, 0
      %p60 = por %p58, %p59
      %p61 = scmp.ne.s32.totalorder %s50, %s53
      %p62 = scmp.eq.s32.totalorder %s19, 1
      %p63 = por %p61, %p62
      %p64 = scmp.ne.s32.totalorder %s53, %s54
      %p65 = scmp.eq.s32.totalorder %s19, 0
      %p66 = por %p64, %p65
      %p67 = scmp.ne.s32.totalorder %s53, %s54
      %p68 = scmp.eq.s32.totalorder %s20, 1
      %p69 = por %p67, %p68
      %p71 = scmp.ne.s32.totalorder %s54, %s70
      %p72 = scmp.eq.s32.totalorder %s20, 0
      %p73 = por %p71, %p72
      %s75 = sadd.s32 %s74, 1
      %p78 = scmp.eq.s32.totalorder %s14, 1
      %p79 = scmp.ne.s32.totalorder %s74, %s76
      %p80 = scmp.eq.s32.totalorder %s14, 0
      %p81 = por %p79, %p80
      %p82 = scmp.ne.s32.totalorder %s74, %s76
      %p83 = scmp.eq.s32.totalorder %s19, 1
      %p84 = por %p82, %p83
      %p85 = scmp.ne.s32.totalorder %s76, %s77
      %p86 = scmp.eq.s32.totalorder %s19, 0
      %p87 = por %p85, %p86
      %p88 = scmp.ne.s32.totalorder %s76, %s77
      %p89 = scmp.eq.s32.totalorder %s20, 1
      %p90 = por %p88, %p89
      %p92 = scmp.ne.s32.totalorder %s77, %s91
      %p93 = scmp.eq.s32.totalorder %s20, 0
      %p94 = por %p92, %p93
      %s96 = sadd.s32 %s95, 1
      %p99 = scmp.eq.s32.totalorder %s14, 1
      %p100 = scmp.ne.s32.totalorder %s95, %s97
      %p101 = scmp.eq.s32.totalorder %s14, 0
      %p102 = por %p100, %p101
      %p103 = scmp.ne.s32.totalorder %s95, %s97
      %p104 = scmp.eq.s32.totalorder %s19, 1
      %p105 = por %p103, %p104
      %p106 = scmp.ne.s32.totalorder %s97, %s98
      %p107 = scmp.eq.s32.totalorder %s19, 0
      %p108 = por %p106, %p107
      %p109 = scmp.ne.s32.totalorder %s97, %s98
      %p110 = scmp.eq.s32.totalorder %s20, 1
      %p111 = por %p109, %p110
      %p113 = scmp.ne.s32.totalorder %s98, %s112
      %p114 = scmp.eq.s32.totalorder %s20, 0
      %p115 = por %p113, %p114
      %s117 = sadd.s32 %s116, 1
      %p120 = scmp.eq.s32.totalorder %s14, 1
      %p121 = scmp.ne.s32.totalorder %s116, %s118
      %p122 = scmp.eq.s32.totalorder %s14, 0
      %p123 = por %p121, %p122
      %p124 = scmp.ne.s32.totalorder %s116, %s118
      %p125 = scmp.eq.s32.totalorder %s19, 1
      %p126 = por %p124, %p125
      %p127 = scmp.ne.s32.totalorder %s118, %s119
      %p128 = scmp.eq.s32.totalorder %s19, 0
      %p129 = por %p127, %p128
      %p130 = scmp.ne.s32.totalorder %s118, %s119
      %p131 = scmp.eq.s32.totalorder %s20, 1
      %p132 = por %p130, %p131
      %p134 = scmp.ne.s32.totalorder %s119, %s133
      %p135 = scmp.eq.s32.totalorder %s20, 0
      %p136 = por %p134, %p135
      %s137 = ssub.s32 %s14, %s21
      %p138 = scmp.eq.s32.totalorder %s137, 0
      %s140 = sadd.s32 %s139, 1
      %s141 = scalar_select %p138, %s139, %s140
      %p144 = pneg %p138
      %p145 = scmp.eq.s32.totalorder %s14, 1
      %p146 = por %p144, %p145
      %p147 = scmp.ne.s32.totalorder %s139, %s142
      %p148 = scmp.eq.s32.totalorder %s14, 0
      %p149 = por %p147, %p148
      %p150 = scmp.ne.s32.totalorder %s139, %s142
      %p151 = scmp.eq.s32.totalorder %s19, 1
      %p152 = por %p150, %p151
      %p153 = scmp.ne.s32.totalorder %s142, %s143
      %p154 = scmp.eq.s32.totalorder %s19, 0
      %p155 = por %p153, %p154
      %p156 = scmp.ne.s32.totalorder %s142, %s143
      %p157 = scmp.eq.s32.totalorder %s20, 1
      %p158 = por %p156, %p157
      %p160 = scmp.ne.s32.totalorder %s143, %s159
      %p161 = scmp.eq.s32.totalorder %s20, 0
      %p162 = por %p160, %p161
      %p163 = scmp.le.s32.totalorder 1, %s14
      %p164 = scmp.lt.s32.totalorder %s14, 3
      %p165 = pnand %p163, %p164
      %p166 = pneg %p165
      // Predicated region
      $region9: #{spatial_attention.1} parent=5 // pred_check
        _
      $region10: #{spatial_attention.1} parent=5 // pred_check_branch
        %168 = sbr.rel (%p165) target = $region12
      $region11: #{spatial_attention.1} parent=5 // pred_region
        %s169 = ssub.s32 %s14, 1
        // Predicated region
        $region13: #{spatial_attention.1} parent=11 // pred_check
          %p170 = pneg %p87
        $region14: #{spatial_attention.1} parent=11 // pred_check_branch
          %172 = sbr.rel (%p170) target = $region16
        $region15: #{spatial_attention.1} parent=11 // pred_region
          _
        $region16: #{spatial_attention.1} parent=11 // pred_fallthru
          _
        // Predicated region
        $region17: #{spatial_attention.1} parent=11 // pred_check
          %p173 = pneg %p108
        $region18: #{spatial_attention.1} parent=11 // pred_check_branch
          %175 = sbr.rel (%p173) target = $region20
        $region19: #{spatial_attention.1} parent=11 // pred_region
          _
        $region20: #{spatial_attention.1} parent=11 // pred_fallthru
          _
        // Predicated region
        $region21: #{spatial_attention.1} parent=11 // pred_check
          %p176 = pneg %p129
        $region22: #{spatial_attention.1} parent=11 // pred_check_branch
          %178 = sbr.rel (%p176) target = $region24
        $region23: #{spatial_attention.1} parent=11 // pred_region
          _
        $region24: #{spatial_attention.1} parent=11 // pred_fallthru
          _
      $region12: #{spatial_attention.1} parent=5 // pred_fallthru
        _
      %p179 = scmp.lt.s32.totalorder %s14, 2
      // Predicated region
      $region25: #{spatial_attention.1} parent=5 // pred_check
        %p180 = pneg %p179
      $region26: #{spatial_attention.1} parent=5 // pred_check_branch
        %182 = sbr.rel (%p180) target = $region28
      $region27: #{spatial_attention.1} parent=5 // pred_region
        // Predicated region
        $region29: #{spatial_attention.1} parent=27 // pred_check
          %p183 = pneg %p34
        $region30: #{spatial_attention.1} parent=27 // pred_check_branch
          %185 = sbr.rel (%p183) target = $region32
        $region31: #{spatial_attention.1} parent=27 // pred_region
          %p186 = scmp.lt.s32.totalorder %s14, 1
          %s187 = scalar_select %p186, %s14, 1
          %s188 = smul.addr %s187, 16
          %s189 = smul.addr %s188, 8
          %s190 = scalar_lea.vmem %s0, %s189
        $region32: #{spatial_attention.1} parent=27 // pred_fallthru
          _
        // Predicated region
        $region33: #{spatial_attention.1} parent=27 // pred_check
          %p191 = pneg %p60
        $region34: #{spatial_attention.1} parent=27 // pred_check_branch
          %193 = sbr.rel (%p191) target = $region36
        $region35: #{spatial_attention.1} parent=27 // pred_region
          %p194 = scmp.lt.s32.totalorder %s14, 1
          %s195 = scalar_select %p194, %s14, 1
          %s196 = smul.addr %s195, 6
          %s197 = smul.addr %s196, 8
          %s198 = scalar_lea.vmem %s1, %s197
        $region36: #{spatial_attention.1} parent=27 // pred_fallthru
          _
      $region28: #{spatial_attention.1} parent=5 // pred_fallthru
        _
      %p199 = scmp.le.s32.totalorder 1, %s14
      %p200 = scmp.lt.s32.totalorder %s14, 3
      %p201 = pnand %p199, %p200
      %p202 = pneg %p201
      // Predicated region
      $region37: #{spatial_attention.1} parent=5 // pred_check
        _
      $region38: #{spatial_attention.1} parent=5 // pred_check_branch
        %204 = sbr.rel (%p201) target = $region40
      $region39: #{spatial_attention.1} parent=5 // pred_region
        %s205 = ssub.s32 %s14, 1
        %p206 = scmp.lt.s32.totalorder %s19, 1
        %s207 = scalar_select %p206, %s19, 1
        %s208 = smul.addr %s207, 16
        %s209 = smul.addr %s208, 8
        %s210 = scalar_lea.vmem %s0, %s209
        %p211 = pneg %p40
        %p212 = pneg %p37
        %p213 = scmp.lt.s32.totalorder %s19, 1
        %s214 = scalar_select %p213, %s19, 1
        %s215 = smul.addr %s214, 6
        %s216 = smul.addr %s215, 8
        %s217 = scalar_lea.vmem %s1, %s216
        %p218 = pneg %p66
        %p219 = pneg %p63
        %p220 = pneg %p87
        %p221 = pneg %p84
        %p222 = pneg %p108
        %p223 = pneg %p105
        %p224 = pneg %p129
        %p225 = pneg %p126
        %p226 = pneg %p155
        %p227 = pneg %p152
        %s228 = sand.u32 %s142, 1
        %s229 = scalar_lea.sflag [#allocation3], %s228
        %s230 = sand.u32 %s142, 1
        %s231 = smul.addr %s230, 128
        %s232 = scalar_lea.vmem [#allocation2], %s231
        %p233 = scmp.lt.s32.totalorder %s19, 1
        %s234 = scalar_select %p233, %s19, 1
        %s235 = smul.addr %s234, 16
        %s236 = smul.addr %s235, 8
        %s237 = scalar_lea.vmem %s0, %s236
        %p238 = scmp.lt.s32.totalorder %s19, 1
        %s239 = scalar_select %p238, %s19, 1
        %s240 = smul.addr %s239, 6
        %s241 = smul.addr %s240, 8
        %s242 = scalar_lea.vmem %s1, %s241
        %v244 = vld [vmem:[%s2] sm:$0xff]
        %v245 = vld [vmem:[%s2 + $0x8] sm:$0xff]
        %v246 = vld [vmem:[%s2 + $0x10] sm:$0xff]
        %v247 = vld [vmem:[%s2 + $0x18] sm:$0xff]
        %v248 = vld [vmem:[%s2 + $0x20] sm:$0xff]
        %v249 = vld [vmem:[%s2 + $0x28] sm:$0xff]
        %v250 = vld [vmem:[%s3] sm:$0xff]
        %v251 = vld [vmem:[%s3 + $0x8] sm:$0xff]
        %v252 = vld [vmem:[%s3 + $0x10] sm:$0xff]
        %v253 = vld [vmem:[%s3 + $0x18] sm:$0xff]
        %v254 = vld [vmem:[%s3 + $0x20] sm:$0xff]
        %v255 = vld [vmem:[%s3 + $0x28] sm:$0xff]
        %v256 = vld [vmem:[%s3 + $0x30] sm:$0xff]
        %v257 = vld [vmem:[%s3 + $0x38] sm:$0xff]
        %v258 = vld [vmem:[%s3 + $0x40] sm:$0xff]
        %v259 = vld [vmem:[%s3 + $0x48] sm:$0xff]
        %v260 = vld [vmem:[%s3 + $0x50] sm:$0xff]
        %v261 = vld [vmem:[%s3 + $0x58] sm:$0xff]
        %v262 = vld [vmem:[%s3 + $0x60] sm:$0xff]
        %v263 = vld [vmem:[%s3 + $0x68] sm:$0xff]
        %v264 = vld [vmem:[%s3 + $0x70] sm:$0xff]
        %v265 = vld [vmem:[%s3 + $0x78] sm:$0xff]
        %v266 = vld [vmem:[%s242] sm:$0xff]
        %v267 = vld [vmem:[%s242 + $0x8] sm:$0xff]
        %v268 = vld [vmem:[%s242 + $0x10] sm:$0xff]
        %v269 = vld [vmem:[%s242 + $0x18] sm:$0xff]
        %v270 = vld [vmem:[%s242 + $0x20] sm:$0xff]
        %v271 = vld [vmem:[%s242 + $0x28] sm:$0xff]
        %vm272 = vcmask 392192
        %v274 = vsel %vm272, %v244, 0
        %v277 = vsel %vm272, %v245, 0
        %v280 = vsel %vm272, %v246, 0
        %v283 = vsel %vm272, %v247, 0
        %v286 = vsel %vm272, %v248, 0
        %v289 = vsel %vm272, %v249, 0
        %291 = vmatprep.subr.mxu0 0.0
        %292 = vmatpush1.msra.mxu0 %v266
        %293 = vmatprep.subr.mxu0 0.0
        %294 = vmatpush1.msra.mxu0 %v267
        %295 = vmatprep.subr.mxu0 0.0
        %296 = vmatpush1.msra.mxu0 %v268
        %297 = vmatprep.subr.mxu0 0.0
        %298 = vmatpush1.msra.mxu0 %v269
        %299 = vmatprep.subr.mxu0 0.0
        %300 = vmatpush1.msra.mxu0 %v270
        %301 = vmatprep.subr.mxu0 0.0
        %302 = vmatpush1.msra.mxu0 %v271
        %303 = vmatprep.subr.mxu0 0.0
        %304 = vmatpush1.msra.mxu0 0.0
        %305 = vmatprep.subr.mxu0 0.0
        %306 = vmatpush1.msra.mxu0 0.0
        %307 = vmatprep.subr.mxu0 0.0
        %308 = vmatpush1.msra.mxu0 0.0
        %309 = vmatprep.subr.mxu0 0.0
        %310 = vmatpush1.msra.mxu0 0.0
        %311 = vmatprep.subr.mxu0 0.0
        %312 = vmatpush1.msra.mxu0 0.0
        %313 = vmatprep.subr.mxu0 0.0
        %314 = vmatpush1.msra.mxu0 0.0
        %315 = vmatprep.subr.mxu0 0.0
        %316 = vmatpush1.msra.mxu0 0.0
        %317 = vmatprep.subr.mxu0 0.0
        %318 = vmatpush1.msra.mxu0 0.0
        %319 = vmatprep.subr.mxu0 0.0
        %320 = vmatpush1.msra.mxu0 0.0
        %321 = vmatprep.subr.mxu0 0.0
        %322 = vmatpush1.msra.mxu0 0.0
        %323 = vmatprep.subr.mxu0 0.0
        %324 = vmatpush1.msra.mxu0 0.0
        %325 = vmatprep.subr.mxu0 0.0
        %326 = vmatpush1.msra.mxu0 0.0
        %327 = vmatprep.subr.mxu0 0.0
        %328 = vmatpush1.msra.mxu0 0.0
        %329 = vmatprep.subr.mxu0 0.0
        %330 = vmatpush1.msra.mxu0 0.0
        %331 = vmatprep.subr.mxu0 0.0
        %332 = vmatpush1.msra.mxu0 0.0
        %333 = vmatprep.subr.mxu0 0.0
        %334 = vmatpush1.msra.mxu0 0.0
        %335 = vmatprep.subr.mxu0 0.0
        %336 = vmatpush1.msra.mxu0 0.0
        %337 = vmatprep.subr.mxu0 0.0
        %338 = vmatpush1.msra.mxu0 0.0
        %339 = vmatprep.subr.mxu0 0.0
        %340 = vmatpush1.msra.mxu0 0.0
        %341 = vmatprep.subr.mxu0 0.0
        %342 = vmatpush1.msra.mxu0 0.0
        %343 = vmatprep.subr.mxu0 0.0
        %344 = vmatpush1.msra.mxu0 0.0
        %345 = vmatprep.subr.mxu0 0.0
        %346 = vmatpush1.msra.mxu0 0.0
        %347 = vmatprep.subr.mxu0 0.0
        %348 = vmatpush1.msra.mxu0 0.0
        %349 = vmatprep.subr.mxu0 0.0
        %350 = vmatpush1.msra.mxu0 0.0
        %351 = vmatprep.subr.mxu0 0.0
        %352 = vmatpush1.msra.mxu0 0.0
        %353 = vmatprep.subr.mxu0 0.0
        %354 = vmatpush1.msra.mxu0 0.0
        %355 = vmatprep.mubr.f32.mxu0 0.0
        %356 = vmatmul.mubr.f32.gmra.mrb[0].mxu0 %v274
        %v357 = vpop.f32.mrb[0].mxu0
        %v358 = vadd.f32 0.0, %v357
        %v359 = vpop.f32.mrb[0].mxu0
        %360 = vmatprep.mubr.f32.mxu0 0.0
        %361 = vmatmul.mubr.f32.gmra.mrb[0].mxu0 %v277
        %v362 = vpop.f32.mrb[0].mxu0
        %v363 = vadd.f32 0.0, %v362
        %v364 = vpop.f32.mrb[0].mxu0
        %365 = vmatprep.mubr.f32.mxu0 0.0
        %366 = vmatmul.mubr.f32.gmra.mrb[0].mxu0 %v280
        %v367 = vpop.f32.mrb[0].mxu0
        %v368 = vadd.f32 0.0, %v367
        %v369 = vpop.f32.mrb[0].mxu0
        %370 = vmatprep.mubr.f32.mxu0 0.0
        %371 = vmatmul.mubr.f32.gmra.mrb[0].mxu0 %v283
        %v372 = vpop.f32.mrb[0].mxu0
        %v373 = vadd.f32 0.0, %v372
        %v374 = vpop.f32.mrb[0].mxu0
        %375 = vmatprep.mubr.f32.mxu0 0.0
        %376 = vmatmul.mubr.f32.gmra.mrb[0].mxu0 %v286
        %v377 = vpop.f32.mrb[0].mxu0
        %v378 = vadd.f32 0.0, %v377
        %v379 = vpop.f32.mrb[0].mxu0
        %380 = vmatprep.mubr.f32.mxu0 0.0
        %381 = vmatmul.mubr.f32.gmra.mrb[0].mxu0 %v289
        %v382 = vpop.f32.mrb[0].mxu0
        %v383 = vadd.f32 0.0, %v382
        %v384 = vpop.f32.mrb[0].mxu0
        %385 = vdwg.mxu0
        %v386 = vld [vmem:[%s237] sm:$0xff]
        %v387 = vld [vmem:[%s237 + $0x8] sm:$0xff]
        %v388 = vld [vmem:[%s237 + $0x10] sm:$0xff]
        %v389 = vld [vmem:[%s237 + $0x18] sm:$0xff]
        %v390 = vld [vmem:[%s237 + $0x20] sm:$0xff]
        %v391 = vld [vmem:[%s237 + $0x28] sm:$0xff]
        %v392 = vld [vmem:[%s237 + $0x30] sm:$0xff]
        %v393 = vld [vmem:[%s237 + $0x38] sm:$0xff]
        %v394 = vld [vmem:[%s237 + $0x40] sm:$0xff]
        %v395 = vld [vmem:[%s237 + $0x48] sm:$0xff]
        %v396 = vld [vmem:[%s237 + $0x50] sm:$0xff]
        %v397 = vld [vmem:[%s237 + $0x58] sm:$0xff]
        %v398 = vld [vmem:[%s237 + $0x60] sm:$0xff]
        %v399 = vld [vmem:[%s237 + $0x68] sm:$0xff]
        %v400 = vld [vmem:[%s237 + $0x70] sm:$0xff]
        %v401 = vld [vmem:[%s237 + $0x78] sm:$0xff]
        %v403 = vsel %vm272, %v386, 0
        %v406 = vsel %vm272, %v387, 0
        %v409 = vsel %vm272, %v388, 0
        %v412 = vsel %vm272, %v389, 0
        %v415 = vsel %vm272, %v390, 0
        %v418 = vsel %vm272, %v391, 0
        %v421 = vsel %vm272, %v392, 0
        %v424 = vsel %vm272, %v393, 0
        %v427 = vsel %vm272, %v394, 0
        %v430 = vsel %vm272, %v395, 0
        %v433 = vsel %vm272, %v396, 0
        %v436 = vsel %vm272, %v397, 0
        %v439 = vsel %vm272, %v398, 0
        %v442 = vsel %vm272, %v399, 0
        %v445 = vsel %vm272, %v400, 0
        %v448 = vsel %vm272, %v401, 0
        %450 = vmatprep.subr.mxu0 0.0
        %451 = vmatpush1.msra.mxu0 %v358
        %452 = vmatprep.subr.mxu0 0.0
        %453 = vmatpush1.msra.mxu0 %v363
        %454 = vmatprep.subr.mxu0 0.0
        %455 = vmatpush1.msra.mxu0 %v368
        %456 = vmatprep.subr.mxu0 0.0
        %457 = vmatpush1.msra.mxu0 %v373
        %458 = vmatprep.subr.mxu0 0.0
        %459 = vmatpush1.msra.mxu0 %v378
        %460 = vmatprep.subr.mxu0 0.0
        %461 = vmatpush1.msra.mxu0 %v383
        %462 = vmatprep.subr.mxu0 0.0
        %463 = vmatpush1.msra.mxu0 0.0
        %464 = vmatprep.subr.mxu0 0.0
        %465 = vmatpush1.msra.mxu0 0.0
        %466 = vmatprep.subr.mxu0 0.0
        %467 = vmatpush1.msra.mxu0 0.0
        %468 = vmatprep.subr.mxu0 0.0
        %469 = vmatpush1.msra.mxu0 0.0
        %470 = vmatprep.subr.mxu0 0.0
        %471 = vmatpush1.msra.mxu0 0.0
        %472 = vmatprep.subr.mxu0 0.0
        %473 = vmatpush1.msra.mxu0 0.0
        %474 = vmatprep.subr.mxu0 0.0
        %475 = vmatpush1.msra.mxu0 0.0
        %476 = vmatprep.subr.mxu0 0.0
        %477 = vmatpush1.msra.mxu0 0.0
        %478 = vmatprep.subr.mxu0 0.0
        %479 = vmatpush1.msra.mxu0 0.0
        %480 = vmatprep.subr.mxu0 0.0
        %481 = vmatpush1.msra.mxu0 0.0
        %482 = vmatprep.subr.mxu0 0.0
        %483 = vmatpush1.msra.mxu0 0.0
        %484 = vmatprep.subr.mxu0 0.0
        %485 = vmatpush1.msra.mxu0 0.0
        %486 = vmatprep.subr.mxu0 0.0
        %487 = vmatpush1.msra.mxu0 0.0
        %488 = vmatprep.subr.mxu0 0.0
        %489 = vmatpush1.msra.mxu0 0.0
        %490 = vmatprep.subr.mxu0 0.0
        %491 = vmatpush1.msra.mxu0 0.0
        %492 = vmatprep.subr.mxu0 0.0
        %493 = vmatpush1.msra.mxu0 0.0
        %494 = vmatprep.subr.mxu0 0.0
        %495 = vmatpush1.msra.mxu0 0.0
        %496 = vmatprep.subr.mxu0 0.0
        %497 = vmatpush1.msra.mxu0 0.0
        %498 = vmatprep.subr.mxu0 0.0
        %499 = vmatpush1.msra.mxu0 0.0
        %500 = vmatprep.subr.mxu0 0.0
        %501 = vmatpush1.msra.mxu0 0.0
        %502 = vmatprep.subr.mxu0 0.0
        %503 = vmatpush1.msra.mxu0 0.0
        %504 = vmatprep.subr.mxu0 0.0
        %505 = vmatpush1.msra.mxu0 0.0
        %506 = vmatprep.subr.mxu0 0.0
        %507 = vmatpush1.msra.mxu0 0.0
        %508 = vmatprep.subr.mxu0 0.0
        %509 = vmatpush1.msra.mxu0 0.0
        %510 = vmatprep.subr.mxu0 0.0
        %511 = vmatpush1.msra.mxu0 0.0
        %512 = vmatprep.subr.mxu0 0.0
        %513 = vmatpush1.msra.mxu0 0.0
        %514 = vmatprep.mubr.f32.mxu0 0.0
        %515 = vmatmul.mubr.f32.gmra.mrb[0].mxu0 %v403
        %v516 = vpop.f32.mrb[0].mxu0
        %v517 = vadd.f32 %v250, %v516
        %v518 = vpop.f32.mrb[0].mxu0
        %519 = vmatprep.mubr.f32.mxu0 0.0
        %520 = vmatmul.mubr.f32.gmra.mrb[0].mxu0 %v406
        %v521 = vpop.f32.mrb[0].mxu0
        %v522 = vadd.f32 %v251, %v521
        %v523 = vpop.f32.mrb[0].mxu0
        %524 = vmatprep.mubr.f32.mxu0 0.0
        %525 = vmatmul.mubr.f32.gmra.mrb[0].mxu0 %v409
        %v526 = vpop.f32.mrb[0].mxu0
        %v527 = vadd.f32 %v252, %v526
        %v528 = vpop.f32.mrb[0].mxu0
        %529 = vmatprep.mubr.f32.mxu0 0.0
        %530 = vmatmul.mubr.f32.gmra.mrb[0].mxu0 %v412
        %v531 = vpop.f32.mrb[0].mxu0
        %v532 = vadd.f32 %v253, %v531
        %v533 = vpop.f32.mrb[0].mxu0
        %534 = vmatprep.mubr.f32.mxu0 0.0
        %535 = vmatmul.mubr.f32.gmra.mrb[0].mxu0 %v415
        %v536 = vpop.f32.mrb[0].mxu0
        %v537 = vadd.f32 %v254, %v536
        %v538 = vpop.f32.mrb[0].mxu0
        %539 = vmatprep.mubr.f32.mxu0 0.0
        %540 = vmatmul.mubr.f32.gmra.mrb[0].mxu0 %v418
        %v541 = vpop.f32.mrb[0].mxu0
        %v542 = vadd.f32 %v255, %v541
        %v543 = vpop.f32.mrb[0].mxu0
        %544 = vmatprep.mubr.f32.mxu0 0.0
        %545 = vmatmul.mubr.f32.gmra.mrb[0].mxu0 %v421
        %v546 = vpop.f32.mrb[0].mxu0
        %v547 = vadd.f32 %v256, %v546
        %v548 = vpop.f32.mrb[0].mxu0
        %549 = vmatprep.mubr.f32.mxu0 0.0
        %550 = vmatmul.mubr.f32.gmra.mrb[0].mxu0 %v424
        %v551 = vpop.f32.mrb[0].mxu0
        %v552 = vadd.f32 %v257, %v551
        %v553 = vpop.f32.mrb[0].mxu0
        %554 = vmatprep.mubr.f32.mxu0 0.0
        %555 = vmatmul.mubr.f32.gmra.mrb[0].mxu0 %v427
        %v556 = vpop.f32.mrb[0].mxu0
        %v557 = vadd.f32 %v258, %v556
        %v558 = vpop.f32.mrb[0].mxu0
        %559 = vmatprep.mubr.f32.mxu0 0.0
        %560 = vmatmul.mubr.f32.gmra.mrb[0].mxu0 %v430
        %v561 = vpop.f32.mrb[0].mxu0
        %v562 = vadd.f32 %v259, %v561
        %v563 = vpop.f32.mrb[0].mxu0
        %564 = vmatprep.mubr.f32.mxu0 0.0
        %565 = vmatmul.mubr.f32.gmra.mrb[0].mxu0 %v433
        %v566 = vpop.f32.mrb[0].mxu0
        %v567 = vadd.f32 %v260, %v566
        %v568 = vpop.f32.mrb[0].mxu0
        %569 = vmatprep.mubr.f32.mxu0 0.0
        %570 = vmatmul.mubr.f32.gmra.mrb[0].mxu0 %v436
        %v571 = vpop.f32.mrb[0].mxu0
        %v572 = vadd.f32 %v261, %v571
        %v573 = vpop.f32.mrb[0].mxu0
        %574 = vmatprep.mubr.f32.mxu0 0.0
        %575 = vmatmul.mubr.f32.gmra.mrb[0].mxu0 %v439
        %v576 = vpop.f32.mrb[0].mxu0
        %v577 = vadd.f32 %v262, %v576
        %v578 = vpop.f32.mrb[0].mxu0
        %579 = vmatprep.mubr.f32.mxu0 0.0
        %580 = vmatmul.mubr.f32.gmra.mrb[0].mxu0 %v442
        %v581 = vpop.f32.mrb[0].mxu0
        %v582 = vadd.f32 %v263, %v581
        %v583 = vpop.f32.mrb[0].mxu0
        %584 = vmatprep.mubr.f32.mxu0 0.0
        %585 = vmatmul.mubr.f32.gmra.mrb[0].mxu0 %v445
        %v586 = vpop.f32.mrb[0].mxu0
        %v587 = vadd.f32 %v264, %v586
        %v588 = vpop.f32.mrb[0].mxu0
        %589 = vmatprep.mubr.f32.mxu0 0.0
        %590 = vmatmul.mubr.f32.gmra.mrb[0].mxu0 %v448
        %v591 = vpop.f32.mrb[0].mxu0
        %v592 = vadd.f32 %v265, %v591
        %v593 = vpop.f32.mrb[0].mxu0
        %594 = vdwg.mxu0
        %v595 = vxor.u32 %v517, 2147483648
        %v596 = vxor.u32 %v522, 2147483648
        %v597 = vxor.u32 %v527, 2147483648
        %v598 = vxor.u32 %v532, 2147483648
        %v599 = vxor.u32 %v537, 2147483648
        %v600 = vxor.u32 %v542, 2147483648
        %v601 = vxor.u32 %v547, 2147483648
        %v602 = vxor.u32 %v552, 2147483648
        %v603 = vxor.u32 %v557, 2147483648
        %v604 = vxor.u32 %v562, 2147483648
        %v605 = vxor.u32 %v567, 2147483648
        %v606 = vxor.u32 %v572, 2147483648
        %v607 = vxor.u32 %v577, 2147483648
        %v608 = vxor.u32 %v582, 2147483648
        %v609 = vxor.u32 %v587, 2147483648
        %v610 = vxor.u32 %v592, 2147483648
        %v611 = vmul.f32 %v595, 1.442695
        %v612 = vpow.pop %v611
        %v613 = vmul.f32 %v596, 1.442695
        %v614 = vpow.pop %v613
        %v615 = vmul.f32 %v597, 1.442695
        %v616 = vpow.pop %v615
        %v617 = vmul.f32 %v598, 1.442695
        %v618 = vpow.pop %v617
        %v619 = vmul.f32 %v599, 1.442695
        %v620 = vpow.pop %v619
        %v621 = vmul.f32 %v600, 1.442695
        %v622 = vpow.pop %v621
        %v623 = vmul.f32 %v601, 1.442695
        %v624 = vpow.pop %v623
        %v625 = vmul.f32 %v602, 1.442695
        %v626 = vpow.pop %v625
        %v627 = vmul.f32 %v603, 1.442695
        %v628 = vpow.pop %v627
        %v629 = vmul.f32 %v604, 1.442695
        %v630 = vpow.pop %v629
        %v631 = vmul.f32 %v605, 1.442695
        %v632 = vpow.pop %v631
        %v633 = vmul.f32 %v606, 1.442695
        %v634 = vpow.pop %v633
        %v635 = vmul.f32 %v607, 1.442695
        %v636 = vpow.pop %v635
        %v637 = vmul.f32 %v608, 1.442695
        %v638 = vpow.pop %v637
        %v639 = vmul.f32 %v609, 1.442695
        %v640 = vpow.pop %v639
        %v641 = vmul.f32 %v610, 1.442695
        %v642 = vpow.pop %v641
        %v643 = vadd.f32 %v612, 1.0
        %v644 = vadd.f32 %v614, 1.0
        %v645 = vadd.f32 %v616, 1.0
        %v646 = vadd.f32 %v618, 1.0
        %v647 = vadd.f32 %v620, 1.0
        %v648 = vadd.f32 %v622, 1.0
        %v649 = vadd.f32 %v624, 1.0
        %v650 = vadd.f32 %v626, 1.0
        %v651 = vadd.f32 %v628, 1.0
        %v652 = vadd.f32 %v630, 1.0
        %v653 = vadd.f32 %v632, 1.0
        %v654 = vadd.f32 %v634, 1.0
        %v655 = vadd.f32 %v636, 1.0
        %v656 = vadd.f32 %v638, 1.0
        %v657 = vadd.f32 %v640, 1.0
        %v658 = vadd.f32 %v642, 1.0
        %v659 = vrcp.pop %v643
        %v660 = vmul.f32 1.0, %v659
        %v661 = vrcp.pop %v644
        %v662 = vmul.f32 1.0, %v661
        %v663 = vrcp.pop %v645
        %v664 = vmul.f32 1.0, %v663
        %v665 = vrcp.pop %v646
        %v666 = vmul.f32 1.0, %v665
        %v667 = vrcp.pop %v647
        %v668 = vmul.f32 1.0, %v667
        %v669 = vrcp.pop %v648
        %v670 = vmul.f32 1.0, %v669
        %v671 = vrcp.pop %v649
        %v672 = vmul.f32 1.0, %v671
        %v673 = vrcp.pop %v650
        %v674 = vmul.f32 1.0, %v673
        %v675 = vrcp.pop %v651
        %v676 = vmul.f32 1.0, %v675
        %v677 = vrcp.pop %v652
        %v678 = vmul.f32 1.0, %v677
        %v679 = vrcp.pop %v653
        %v680 = vmul.f32 1.0, %v679
        %v681 = vrcp.pop %v654
        %v682 = vmul.f32 1.0, %v681
        %v683 = vrcp.pop %v655
        %v684 = vmul.f32 1.0, %v683
        %v685 = vrcp.pop %v656
        %v686 = vmul.f32 1.0, %v685
        %v687 = vrcp.pop %v657
        %v688 = vmul.f32 1.0, %v687
        %v689 = vrcp.pop %v658
        %v690 = vmul.f32 1.0, %v689
        %v691 = vpack.c.bf16 %v662, %v660
        %v692 = vpack.c.bf16 %v666, %v664
        %v693 = vpack.c.bf16 %v670, %v668
        %v694 = vpack.c.bf16 %v674, %v672
        %v695 = vpack.c.bf16 %v678, %v676
        %v696 = vpack.c.bf16 %v682, %v680
        %v697 = vpack.c.bf16 %v686, %v684
        %v698 = vpack.c.bf16 %v690, %v688
        %v699 = vld [vmem:[%s4] sm:$0xf]
        %v700 = vld [vmem:[%s4 + $0x4] sm:$0xf]
        %v701 = vld [vmem:[%s4 + $0x8] sm:$0xf]
        %v702 = vld [vmem:[%s4 + $0xc] sm:$0xf]
        %v703 = vld [vmem:[%s4 + $0x10] sm:$0xf]
        %v704 = vld [vmem:[%s4 + $0x14] sm:$0xf]
        %v705 = vld [vmem:[%s4 + $0x18] sm:$0xf]
        %v706 = vld [vmem:[%s4 + $0x1c] sm:$0xf]
        %v707 = vld [vmem:[%s4 + $0x20] sm:$0xf]
        %v708 = vld [vmem:[%s4 + $0x24] sm:$0xf]
        %v709 = vld [vmem:[%s4 + $0x28] sm:$0xf]
        %v710 = vld [vmem:[%s4 + $0x2c] sm:$0xf]
        %v711 = vld [vmem:[%s4 + $0x30] sm:$0xf]
        %v712 = vld [vmem:[%s4 + $0x34] sm:$0xf]
        %v713 = vld [vmem:[%s4 + $0x38] sm:$0xf]
        %v714 = vld [vmem:[%s4 + $0x3c] sm:$0xf]
        %v731 = vunpack.c.l.b16 %v699
        %v732 = vunpack.c.l.b16 %v700
        %v733 = vunpack.c.l.b16 %v701
        %v734 = vunpack.c.l.b16 %v702
        %v735 = vunpack.c.l.b16 %v703
        %v736 = vunpack.c.l.b16 %v704
        %v737 = vunpack.c.l.b16 %v705
        %v738 = vunpack.c.l.b16 %v706
        %v739 = vunpack.c.l.b16 %v707
        %v740 = vunpack.c.l.b16 %v708
        %v741 = vunpack.c.l.b16 %v709
        %v742 = vunpack.c.l.b16 %v710
        %v743 = vunpack.c.l.b16 %v711
        %v744 = vunpack.c.l.b16 %v712
        %v745 = vunpack.c.l.b16 %v713
        %v746 = vunpack.c.l.b16 %v714
        %v747 = vpack.c.b16 %v732, %v731
        %v748 = vpack.c.b16 %v734, %v733
        %v749 = vpack.c.b16 %v736, %v735
        %v750 = vpack.c.b16 %v738, %v737
        %v751 = vpack.c.b16 %v740, %v739
        %v752 = vpack.c.b16 %v742, %v741
        %v753 = vpack.c.b16 %v744, %v743
        %v754 = vpack.c.b16 %v746, %v745
        %763 = vmatprep.subr.bf16.mxu0 0
        %764 = vmatpush1.bf16.msra.mxu0 %v691
        %765 = vmatprep.subr.bf16.mxu0 0
        %766 = vmatpush1.bf16.msra.mxu0 %v692
        %767 = vmatprep.subr.bf16.mxu0 0
        %768 = vmatpush1.bf16.msra.mxu0 %v693
        %769 = vmatprep.subr.bf16.mxu0 0
        %770 = vmatpush1.bf16.msra.mxu0 %v694
        %771 = vmatprep.subr.bf16.mxu0 0
        %772 = vmatpush1.bf16.msra.mxu0 %v695
        %773 = vmatprep.subr.bf16.mxu0 0
        %774 = vmatpush1.bf16.msra.mxu0 %v696
        %775 = vmatprep.subr.bf16.mxu0 0
        %776 = vmatpush1.bf16.msra.mxu0 %v697
        %777 = vmatprep.subr.bf16.mxu0 0
        %778 = vmatpush1.bf16.msra.mxu0 %v698
        %779 = vmatprep.subr.bf16.mxu0 0
        %780 = vmatpush1.bf16.msra.mxu0 0
        %781 = vmatprep.subr.bf16.mxu0 0
        %782 = vmatpush1.bf16.msra.mxu0 0
        %783 = vmatprep.subr.bf16.mxu0 0
        %784 = vmatpush1.bf16.msra.mxu0 0
        %785 = vmatprep.subr.bf16.mxu0 0
        %786 = vmatpush1.bf16.msra.mxu0 0
        %787 = vmatprep.subr.bf16.mxu0 0
        %788 = vmatpush1.bf16.msra.mxu0 0
        %789 = vmatprep.subr.bf16.mxu0 0
        %790 = vmatpush1.bf16.msra.mxu0 0
        %791 = vmatprep.subr.bf16.mxu0 0
        %792 = vmatpush1.bf16.msra.mxu0 0
        %793 = vmatprep.subr.bf16.mxu0 0
        %794 = vmatpush1.bf16.msra.mxu0 0
        %795 = vmatprep.mubr.bf16.mxu0 0
        %796 = vmatmul.mubr.bf16.gmra.mrb[0].mxu0 %v747
        %v797 = vpop.f32.mrb[0].mxu0
        %v798 = vadd.f32 0.0, %v797
        %v799 = vpop.f32.mrb[0].mxu0
        %v800 = vpop.f32.mrb[0].mxu0
        %v801 = vadd.f32 0.0, %v800
        %v802 = vpop.f32.mrb[0].mxu0
        %803 = vmatprep.mubr.bf16.mxu0 0
        %804 = vmatmul.mubr.bf16.gmra.mrb[0].mxu0 %v748
        %v805 = vpop.f32.mrb[0].mxu0
        %v806 = vadd.f32 0.0, %v805
        %v807 = vpop.f32.mrb[0].mxu0
        %v808 = vpop.f32.mrb[0].mxu0
        %v809 = vadd.f32 0.0, %v808
        %v810 = vpop.f32.mrb[0].mxu0
        %811 = vmatprep.mubr.bf16.mxu0 0
        %812 = vmatmul.mubr.bf16.gmra.mrb[0].mxu0 %v749
        %v813 = vpop.f32.mrb[0].mxu0
        %v814 = vadd.f32 0.0, %v813
        %v815 = vpop.f32.mrb[0].mxu0
        %v816 = vpop.f32.mrb[0].mxu0
        %v817 = vadd.f32 0.0, %v816
        %v818 = vpop.f32.mrb[0].mxu0
        %819 = vmatprep.mubr.bf16.mxu0 0
        %820 = vmatmul.mubr.bf16.gmra.mrb[0].mxu0 %v750
        %v821 = vpop.f32.mrb[0].mxu0
        %v822 = vadd.f32 0.0, %v821
        %v823 = vpop.f32.mrb[0].mxu0
        %v824 = vpop.f32.mrb[0].mxu0
        %v825 = vadd.f32 0.0, %v824
        %v826 = vpop.f32.mrb[0].mxu0
        %827 = vmatprep.mubr.bf16.mxu0 0
        %828 = vmatmul.mubr.bf16.gmra.mrb[0].mxu0 %v751
        %v829 = vpop.f32.mrb[0].mxu0
        %v830 = vadd.f32 0.0, %v829
        %v831 = vpop.f32.mrb[0].mxu0
        %v832 = vpop.f32.mrb[0].mxu0
        %v833 = vadd.f32 0.0, %v832
        %v834 = vpop.f32.mrb[0].mxu0
        %835 = vmatprep.mubr.bf16.mxu0 0
        %836 = vmatmul.mubr.bf16.gmra.mrb[0].mxu0 %v752
        %v837 = vpop.f32.mrb[0].mxu0
        %v838 = vadd.f32 0.0, %v837
        %v839 = vpop.f32.mrb[0].mxu0
        %v840 = vpop.f32.mrb[0].mxu0
        %v841 = vadd.f32 0.0, %v840
        %v842 = vpop.f32.mrb[0].mxu0
        %843 = vmatprep.mubr.bf16.mxu0 0
        %844 = vmatmul.mubr.bf16.gmra.mrb[0].mxu0 %v753
        %v845 = vpop.f32.mrb[0].mxu0
        %v846 = vadd.f32 0.0, %v845
        %v847 = vpop.f32.mrb[0].mxu0
        %v848 = vpop.f32.mrb[0].mxu0
        %v849 = vadd.f32 0.0, %v848
        %v850 = vpop.f32.mrb[0].mxu0
        %851 = vmatprep.mubr.bf16.mxu0 0
        %852 = vmatmul.mubr.bf16.gmra.mrb[0].mxu0 %v754
        %v853 = vpop.f32.mrb[0].mxu0
        %v854 = vadd.f32 0.0, %v853
        %v855 = vpop.f32.mrb[0].mxu0
        %v856 = vpop.f32.mrb[0].mxu0
        %v857 = vadd.f32 0.0, %v856
        %v858 = vpop.f32.mrb[0].mxu0
        %859 = vdwg.mxu0
        %v860 = vmax.f32 %v798, %v814
        %v861 = vmax.f32 %v801, %v817
        %v862 = vmax.f32 %v806, %v822
        %v863 = vmax.f32 %v809, %v825
        %v864 = vmax.f32 %v860, %v830
        %v865 = vmax.f32 %v861, %v833
        %v866 = vmax.f32 %v862, %v838
        %v867 = vmax.f32 %v863, %v841
        %v868 = vmax.f32 %v864, %v846
        %v869 = vmax.f32 %v865, %v849
        %v870 = vmax.f32 %v866, %v854
        %v871 = vmax.f32 %v867, %v857
        %v872 = vmax.f32 %v868, %v869
        %v873 = vmax.f32 %v870, %v871
        %v874 = vmax.f32 %v872, %v873
        %v875 = vrot.slane %v874, 4
        %v876 = vmax.f32 %v874, %v875
        %v877 = vrot.slane %v876, 2
        %v878 = vmax.f32 %v876, %v877
        %v879 = vrot.slane %v878, 1
        %v880 = vmax.f32 %v878, %v879
        %v881 = vsub.f32 %v798, %v880
        %v882 = vsub.f32 %v801, %v880
        %v883 = vsub.f32 %v806, %v880
        %v884 = vsub.f32 %v809, %v880
        %v885 = vsub.f32 %v814, %v880
        %v886 = vsub.f32 %v817, %v880
        %v887 = vsub.f32 %v822, %v880
        %v888 = vsub.f32 %v825, %v880
        %v889 = vsub.f32 %v830, %v880
        %v890 = vsub.f32 %v833, %v880
        %v891 = vsub.f32 %v838, %v880
        %v892 = vsub.f32 %v841, %v880
        %v893 = vsub.f32 %v846, %v880
        %v894 = vsub.f32 %v849, %v880
        %v895 = vsub.f32 %v854, %v880
        %v896 = vsub.f32 %v857, %v880
        %v897 = vmul.f32 %v881, 1.442695
        %v898 = vpow.pop %v897
        %v899 = vmul.f32 %v882, 1.442695
        %v900 = vpow.pop %v899
        %v901 = vmul.f32 %v883, 1.442695
        %v902 = vpow.pop %v901
        %v903 = vmul.f32 %v884, 1.442695
        %v904 = vpow.pop %v903
        %v905 = vmul.f32 %v885, 1.442695
        %v906 = vpow.pop %v905
        %v907 = vmul.f32 %v886, 1.442695
        %v908 = vpow.pop %v907
        %v909 = vmul.f32 %v887, 1.442695
        %v910 = vpow.pop %v909
        %v911 = vmul.f32 %v888, 1.442695
        %v912 = vpow.pop %v911
        %v913 = vmul.f32 %v889, 1.442695
        %v914 = vpow.pop %v913
        %v915 = vmul.f32 %v890, 1.442695
        %v916 = vpow.pop %v915
        %v917 = vmul.f32 %v891, 1.442695
        %v918 = vpow.pop %v917
        %v919 = vmul.f32 %v892, 1.442695
        %v920 = vpow.pop %v919
        %v921 = vmul.f32 %v893, 1.442695
        %v922 = vpow.pop %v921
        %v923 = vmul.f32 %v894, 1.442695
        %v924 = vpow.pop %v923
        %v925 = vmul.f32 %v895, 1.442695
        %v926 = vpow.pop %v925
        %v927 = vmul.f32 %v896, 1.442695
        %v928 = vpow.pop %v927
        %v929 = vadd.f32 %v898, %v900
        %v930 = vadd.f32 %v929, %v902
        %v931 = vadd.f32 %v930, %v904
        %v932 = vadd.f32 %v931, %v906
        %v933 = vadd.f32 %v932, %v908
        %v934 = vadd.f32 %v933, %v910
        %v935 = vadd.f32 %v934, %v912
        %v936 = vadd.f32 %v935, %v914
        %v937 = vadd.f32 %v936, %v916
        %v938 = vadd.f32 %v937, %v918
        %v939 = vadd.f32 %v938, %v920
        %v940 = vadd.f32 %v939, %v922
        %v941 = vadd.f32 %v940, %v924
        %v942 = vadd.f32 %v941, %v926
        %v943 = vadd.f32 %v942, %v928
        %v944 = vrot.slane %v943, 4
        %v945 = vadd.f32 %v943, %v944
        %v946 = vrot.slane %v945, 2
        %v947 = vadd.f32 %v945, %v946
        %v948 = vrot.slane %v947, 1
        %v949 = vadd.f32 %v947, %v948
        %v950 = vrcp.pop %v949
        %v951 = vmul.f32 %v898, %v950
        %v952 = vmul.f32 %v900, %v950
        %v953 = vmul.f32 %v902, %v950
        %v954 = vmul.f32 %v904, %v950
        %v955 = vmul.f32 %v906, %v950
        %v956 = vmul.f32 %v908, %v950
        %v957 = vmul.f32 %v910, %v950
        %v958 = vmul.f32 %v912, %v950
        %v959 = vmul.f32 %v914, %v950
        %v960 = vmul.f32 %v916, %v950
        %v961 = vmul.f32 %v918, %v950
        %v962 = vmul.f32 %v920, %v950
        %v963 = vmul.f32 %v922, %v950
        %v964 = vmul.f32 %v924, %v950
        %v965 = vmul.f32 %v926, %v950
        %v966 = vmul.f32 %v928, %v950
        %967 = vst [vmem:[%s232] sm:$0xff] %v951
        %968 = vst [vmem:[%s232 + $0x8] sm:$0xff] %v952
        %969 = vst [vmem:[%s232 + $0x10] sm:$0xff] %v953
        %970 = vst [vmem:[%s232 + $0x18] sm:$0xff] %v954
        %971 = vst [vmem:[%s232 + $0x20] sm:$0xff] %v955
        %972 = vst [vmem:[%s232 + $0x28] sm:$0xff] %v956
        %973 = vst [vmem:[%s232 + $0x30] sm:$0xff] %v957
        %974 = vst [vmem:[%s232 + $0x38] sm:$0xff] %v958
        %975 = vst [vmem:[%s232 + $0x40] sm:$0xff] %v959
        %976 = vst [vmem:[%s232 + $0x48] sm:$0xff] %v960
        %977 = vst [vmem:[%s232 + $0x50] sm:$0xff] %v961
        %978 = vst [vmem:[%s232 + $0x58] sm:$0xff] %v962
        %979 = vst [vmem:[%s232 + $0x60] sm:$0xff] %v963
        %980 = vst [vmem:[%s232 + $0x68] sm:$0xff] %v964
        %981 = vst [vmem:[%s232 + $0x70] sm:$0xff] %v965
        %982 = vst [vmem:[%s232 + $0x78] sm:$0xff] %v966
        %s983 = sand.u32 %s142, 1
        %s984 = scalar_lea.sflag [#allocation3], %s983
        %s985 = sand.u32 %s142, 1
        %s986 = smul.addr %s985, 128
        %s987 = scalar_lea.vmem [#allocation2], %s986
        // Predicated region
        $region41: #{spatial_attention.1} parent=39 // pred_check
          %p988 = pneg %p152
        $region42: #{spatial_attention.1} parent=39 // pred_check_branch
          %990 = sbr.rel (%p988) target = $region44
        $region43: #{spatial_attention.1} parent=39 // pred_region
          %s992 = ssub.s32 2048, 2048
          %993 = vsyncadd %s984, %s992
          %s994 = smul.addr %s19, 16
          %s995 = smul.addr %s994, 128
          %s996 = scalar_lea.hbm %s5, %s995
          %s997 = sshll.u32 %s987, 4
          %s998 = int_to_ptr.vmem [resolvable:$true] %s997
          %1003 = dma.vmem_to_hbm [thread:$0]  %s998, 2048, %s996, %s984, 128, 128, 8
        $region44: #{spatial_attention.1} parent=39 // pred_fallthru
          _
      $region40: #{spatial_attention.1} parent=5 // pred_fallthru
        _
      %p1004 = scmp.le.s32.totalorder 2, %s14
      // Predicated region
      $region45: #{spatial_attention.1} parent=5 // pred_check
        %p1005 = pneg %p1004
      $region46: #{spatial_attention.1} parent=5 // pred_check_branch
        %1007 = sbr.rel (%p1005) target = $region48
      $region47: #{spatial_attention.1} parent=5 // pred_region
        %s1008 = ssub.s32 %s14, 2
        // Predicated region
        $region49: #{spatial_attention.1} parent=47 // pred_check
          %p1009 = pneg %p158
        $region50: #{spatial_attention.1} parent=47 // pred_check_branch
          %1011 = sbr.rel (%p1009) target = $region52
        $region51: #{spatial_attention.1} parent=47 // pred_region
          %s1012 = sand.u32 %s143, 1
          %s1013 = scalar_lea.sflag [#allocation3], %s1012
          %s1014 = sand.u32 %s143, 1
          %s1015 = smul.addr %s1014, 128
          %s1016 = scalar_lea.vmem [#allocation2], %s1015
          %1017 = dma.done %s1013, 2048
        $region52: #{spatial_attention.1} parent=47 // pred_fallthru
          _
      $region48: #{spatial_attention.1} parent=5 // pred_fallthru
        _
    $region6: #{spatial_attention.1} parent=1 // loop_footer
      %s18 = sadd.s32 1, %s14
    $region7: #{spatial_attention.1} parent=1 // loop_footer_branch
      %13 = sbr.rel target = $region3
    $region8: #{spatial_attention.1} parent=1 // loop_exit
      _
    %1018 = vsyncpa [#allocation3], 1
    %s1019 = scalar_lea.sflag [#allocation3], 1
    %1020 = vsyncpa %s1019, 1

</llo_original>
